<compile_context>
chip_gen: v6e
topology: v6e:2x2x1
jax: 0.10.0
libtpu: 0.0.40
codegen_flags: <defaults>
</compile_context>

<pallas_src>
import jax
import jax.numpy as jnp
from jax.experimental import pallas as pl
from jax.experimental.pallas import tpu as pltpu

HIDDEN_NEURONS = 8
IN_FEATURES = 16   # stand-in for X.shape[1] (dataset-dependent in the original)


def fnn_kernel(x_ref, w_ref, b_ref, o_ref):
    # x_ref: (TB, F) batch tile, natural row-major layout (streamed per step)
    # w_ref: (1, F)  collapsed weight, resident in VMEM across the grid
    # b_ref: (1, 1)  collapsed bias, SMEM scalar
    # o_ref: (TB, 1) per-row probability
    x = x_ref[...].astype(jnp.float32)
    w = w_ref[...].astype(jnp.float32)                          # (1, F) sublane broadcast
    y = jnp.sum(x * w, axis=-1, keepdims=True) + b_ref[0, 0]    # (TB, 1) lane reduce (XLU)
    o_ref[...] = jax.nn.sigmoid(y).astype(o_ref.dtype)          # exp -> EUP slot


def fnn_forward(x, w1, b1, w2, b2, *, batch_tile=2048):
    """x: (B, F); w1: (H, F); b1: (H,); w2: (1, H); b2: (1,). Returns (B, 1) f32."""
    B, F = x.shape

    # --- wrapper-side algebraic collapse of the two Linear layers ------------
    w1f = jnp.asarray(w1, jnp.float32)
    w2f = jnp.asarray(w2, jnp.float32)
    w_eff = (w2f @ w1f).astype(x.dtype)                                   # (1, F)
    b_eff = (w2f @ jnp.asarray(b1, jnp.float32).reshape(-1, 1)
             + jnp.asarray(b2, jnp.float32).reshape(1, 1))                # (1, 1)

    # --- batch tiling: no transpose / pad / cast copies of x -----------------
    if int(batch_tile) >= B:
        tb = B                                   # single block == full array dims
    else:
        tb = max(8, (int(batch_tile) // 8) * 8)  # sublane-aligned streaming tile
    grid = (pl.cdiv(B, tb),)                     # ragged tail masked by Pallas

    itemsize = jnp.dtype(x.dtype).itemsize
    out = pl.pallas_call(
        fnn_kernel,
        out_shape=jax.ShapeDtypeStruct((B, 1), jnp.float32),
        grid=grid,
        in_specs=[
            pl.BlockSpec((tb, F), lambda i: (i, 0)),             # stream x tiles
            pl.BlockSpec((1, F), lambda i: (0, 0)),              # weight resident in VMEM
            pl.BlockSpec(memory_space=pltpu.MemorySpace.SMEM),   # scalar bias in SMEM
        ],
        out_specs=pl.BlockSpec((tb, 1), lambda i: (i, 0)),
        compiler_params=pltpu.CompilerParams(
            # Batch axis is embarrassingly parallel -> shards across the two
            # TensorCores on v7x; harmless on v5e/v6e.
            dimension_semantics=("parallel",),
        ),
        cost_estimate=pl.CostEstimate(
            flops=2 * B * F,
            transcendentals=B,
            bytes_accessed=B * F * itemsize + B * 4 + F * itemsize,
        ),
    )(x, w_eff, b_eff)
    return out


def init_params(key, in_features, hidden):
    """Deterministic init mimicking nn.Linear's U(-1/sqrt(fan_in), 1/sqrt(fan_in))."""
    k1, k2, k3, k4 = jax.random.split(key, 4)
    bound1 = 1.0 / jnp.sqrt(in_features)
    bound2 = 1.0 / jnp.sqrt(hidden)
    w1 = jax.random.uniform(k1, (hidden, in_features), jnp.float32, -bound1, bound1)
    b1 = jax.random.uniform(k2, (hidden,), jnp.float32, -bound1, bound1)
    w2 = jax.random.uniform(k3, (1, hidden), jnp.float32, -bound2, bound2)
    b2 = jax.random.uniform(k4, (1,), jnp.float32, -bound2, bound2)
    return w1, b1, w2, b2


if __name__ == "__main__":
    key = jax.random.PRNGKey(0)
    kx, kp = jax.random.split(key)

    B = 300  # deliberately NOT a multiple of the tile to exercise the masked tail
    x = jax.random.normal(kx, (B, IN_FEATURES), jnp.float32)
    w1, b1, w2, b2 = init_params(kp, IN_FEATURES, HIDDEN_NEURONS)

    # Pure-JAX reference of the original (un-collapsed) forward semantics.
    ref = jax.nn.sigmoid((x @ w1.T + b1) @ w2.T + b2)

    # Streaming path: 3 grid steps, last one ragged (300 = 128 + 128 + 44).
    out_stream = jax.block_until_ready(fnn_forward(x, w1, b1, w2, b2, batch_tile=128))
    # Single-block path: whole batch as one full-array block.
    out_single = jax.block_until_ready(fnn_forward(x, w1, b1, w2, b2, batch_tile=4096))

    assert out_stream.shape == (B, 1), out_stream.shape
    assert out_single.shape == (B, 1), out_single.shape
    assert jnp.allclose(out_stream, ref, atol=1e-5, rtol=1e-5)
    assert jnp.allclose(out_single, ref, atol=1e-5, rtol=1e-5)

    print("KERNEL_OK")
</pallas_src>

<mosaic_0001>
module attributes {stable_mosaic.version = 11 : i64} {
  func.func @fnn_kernel(%arg0: i32, %arg1: memref<128x16xf32, #tpu.memory_space<vmem>>, %arg2: memref<1x16xf32, #tpu.memory_space<vmem>>, %arg3: memref<1x1xf32, #tpu.memory_space<smem>>, %arg4: memref<128x1xf32, #tpu.memory_space<vmem>>) attributes {dimension_semantics = [#tpu.dimension_semantics<parallel>], iteration_bounds = array<i64: 3>, scalar_prefetch = 0 : i64, scratch_operands = 0 : i64, tpu.core_type = #tpu.core_type<tc>, window_params = [{transform_indices = @transform_0, window_bounds = array<i64: 128, 16>}, {pipeline_mode = #tpu.pipeline_mode<synchronous>, transform_indices = @transform_1, window_bounds = array<i64: 1, 16>}, {transform_indices = @transform_2, window_bounds = array<i64: 1, 1>}, {transform_indices = @transform_3, window_bounds = array<i64: 128, 1>}]} {
    %c0 = arith.constant 0 : index
    %c0_0 = arith.constant 0 : index
    %0 = vector.load %arg1[%c0, %c0_0] : memref<128x16xf32, #tpu.memory_space<vmem>>, vector<128x16xf32>
    %c0_1 = arith.constant 0 : index
    %c0_2 = arith.constant 0 : index
    %1 = vector.load %arg2[%c0_1, %c0_2] : memref<1x16xf32, #tpu.memory_space<vmem>>, vector<1x16xf32>
    %2 = vector.broadcast %1 : vector<1x16xf32> to vector<128x16xf32>
    %3 = arith.mulf %0, %2 : vector<128x16xf32>
    %cst = arith.constant dense<0.000000e+00> : vector<128xf32>
    %4 = vector.multi_reduction <add>, %3, %cst [1] : vector<128x16xf32> to vector<128xf32>
    %5 = vector.shape_cast %4 : vector<128xf32> to vector<128x1xf32>
    %c0_3 = arith.constant 0 : index
    %c0_4 = arith.constant 0 : index
    %6 = memref.load %arg3[%c0_3, %c0_4] : memref<1x1xf32, #tpu.memory_space<smem>>
    %7 = vector.broadcast %6 : f32 to vector<128x1xf32>
    %8 = arith.addf %5, %7 : vector<128x1xf32>
    %9 = arith.negf %8 : vector<128x1xf32>
    %10 = math.exp %9 : vector<128x1xf32>
    %cst_5 = arith.constant 1.000000e+00 : f32
    %11 = vector.broadcast %cst_5 : f32 to vector<128x1xf32>
    %12 = arith.addf %11, %10 : vector<128x1xf32>
    %13 = arith.divf %11, %12 : vector<128x1xf32>
    %c0_6 = arith.constant 0 : index
    %c0_7 = arith.constant 0 : index
    %14 = vector.load %arg4[%c0_6, %c0_7] : memref<128x1xf32, #tpu.memory_space<vmem>>, vector<128x1xf32>
    tpu.vector_store %arg4[%c0_6, %c0_7], %13 {strides = array<i32>} : memref<128x1xf32, #tpu.memory_space<vmem>>, vector<128x1xf32>,
    return
  }
  func.func @transform_0(%arg0: i32) -> (i32, i32) {
    %c0_i32 = arith.constant 0 : i32
    %c0_i32_0 = arith.constant 0 : i32
    return %arg0, %c0_i32 : i32, i32
  }
  func.func @transform_1(%arg0: i32) -> (i32, i32) {
    %c0_i32 = arith.constant 0 : i32
    %c0_i32_0 = arith.constant 0 : i32
    %c0_i32_1 = arith.constant 0 : i32
    return %c0_i32, %c0_i32_0 : i32, i32
  }
  func.func @transform_2(%arg0: i32) -> (i32, i32) {
    %c0_i32 = arith.constant 0 : i32
    %c0_i32_0 = arith.constant 0 : i32
    %c0_i32_1 = arith.constant 0 : i32
    return %c0_i32, %c0_i32_0 : i32, i32
  }
  func.func @transform_3(%arg0: i32) -> (i32, i32) {
    %c0_i32 = arith.constant 0 : i32
    %c0_i32_0 = arith.constant 0 : i32
    return %arg0, %c0_i32 : i32, i32
  }
}

</mosaic_0001>

<llo_original>
// kernel: tpu_custom_call.1
$region0: #{tpu_custom_call.1}
  #allocation0 [shape = 'u32[]', space=smem, size = 0x4, offset = 0x4, fixed_abs, tag = 'smem constant byte address 0x4 - core index']
  #allocation1 [shape = 'u32[144,128]{1,0:T(1,128)}', space=vmem, size = 0x12000, scoped, tag = 'internal scratch']
  #allocation2 [shape = 'f32[1,1]{1,0:T(1,128)S(6)}', space=smem, size = 0x200, scoped, tag = 'scoped memory for tpu_custom_call.1']
  %s0 = inlined_call_operand.vmem [shape: f32[300,16], index: 0, kind: input, shape index: {}]
  %s1 = inlined_call_operand.vmem [shape: f32[1,16], index: 1, kind: input, shape index: {}]
  %s2 = inlined_call_operand.<no memory space> [shape: f32[1,1], index: 2, kind: input, shape index: {}]
  %s3 = inlined_call_operand.vmem [shape: f32[300,1], index: 3, kind: output, shape index: {}]
  %s4 = sld [smem:[#allocation0]]
  $region93: #{tpu_custom_call.1} parent=0
    _
  %s6 = ssub.s32 1, %s4
  %s7 = scalar_select 0, %s6, %s4
  %8 = sst [smem:[#allocation2]] %s2
  $region1: #{tpu_custom_call.1} parent=0
    #allocation3 [shape = 'u8[131072]{0}', space=vmem, size = 0x20000, scoped, tag = 'output window, operand 0']
    loop: start=0, step=1, limit=5
    $region2: #{tpu_custom_call.1} parent=1 // loop_pre_header
      _
    $region3: #{tpu_custom_call.1} parent=1 // loop_header
      %s10 = sphi 0, %s14
      %p11 = scmp.ge.s32.totalorder %s10, 5
      %s20 = sphi 0, %s22
      %s23 = sphi 0, %s20
      %s24 = sphi 0, %s23
      %s40 = sphi 0, %s24
      %s44 = sphi 0, %s44
      %s46 = sphi 0, %s44
      %s47 = sphi 0, %s46
      %s61 = sphi 0, %s47
      %s65 = sphi 0, %s65
      %s67 = sphi 0, %s65
      %s68 = sphi 0, %s67
      %s82 = sphi 0, %s68
      %s88 = sphi 0, %s90
      %s91 = sphi 0, %s88
      %s92 = sphi 0, %s91
      %s108 = sphi 0, %s92
    $region4: #{tpu_custom_call.1} parent=1 // loop_header_branch
      %13 = sbr.rel (%p11) target = $region8
    $region5: #{tpu_custom_call.1} parent=1 // loop_body
      %s15 = ssub.s32 %s10, 1
      %s16 = ssub.s32 %s10, 2
      %s17 = sadd.s32 %s10, 1
      %s18 = ssub.s32 %s10, %s17
      %p19 = scmp.eq.s32.totalorder %s18, 0
      %s21 = sadd.s32 %s20, 1
      %s22 = scalar_select %p19, %s20, %s21
      %p25 = pneg %p19
      %p26 = scmp.eq.s32.totalorder %s10, 2
      %p27 = por %p25, %p26
      %p28 = scmp.ne.s32.totalorder %s20, %s23
      %p29 = scmp.eq.s32.totalorder %s10, 0
      %p30 = por %p28, %p29
      %p31 = scmp.ne.s32.totalorder %s20, %s23
      %p32 = scmp.eq.s32.totalorder %s15, 2
      %p33 = por %p31, %p32
      %p34 = scmp.ne.s32.totalorder %s23, %s24
      %p35 = scmp.eq.s32.totalorder %s15, 0
      %p36 = por %p34, %p35
      %p37 = scmp.ne.s32.totalorder %s23, %s24
      %p38 = scmp.eq.s32.totalorder %s16, 2
      %p39 = por %p37, %p38
      %p41 = scmp.ne.s32.totalorder %s24, %s40
      %p42 = scmp.eq.s32.totalorder %s16, 0
      %p43 = por %p41, %p42
      %s45 = sadd.s32 %s44, 1
      %p48 = scmp.eq.s32.totalorder %s10, 2
      %p49 = scmp.ne.s32.totalorder %s44, %s46
      %p50 = scmp.eq.s32.totalorder %s10, 0
      %p51 = por %p49, %p50
      %p52 = scmp.ne.s32.totalorder %s44, %s46
      %p53 = scmp.eq.s32.totalorder %s15, 2
      %p54 = por %p52, %p53
      %p55 = scmp.ne.s32.totalorder %s46, %s47
      %p56 = scmp.eq.s32.totalorder %s15, 0
      %p57 = por %p55, %p56
      %p58 = scmp.ne.s32.totalorder %s46, %s47
      %p59 = scmp.eq.s32.totalorder %s16, 2
      %p60 = por %p58, %p59
      %p62 = scmp.ne.s32.totalorder %s47, %s61
      %p63 = scmp.eq.s32.totalorder %s16, 0
      %p64 = por %p62, %p63
      %s66 = sadd.s32 %s65, 1
      %p69 = scmp.eq.s32.totalorder %s10, 2
      %p70 = scmp.ne.s32.totalorder %s65, %s67
      %p71 = scmp.eq.s32.totalorder %s10, 0
      %p72 = por %p70, %p71
      %p73 = scmp.ne.s32.totalorder %s65, %s67
      %p74 = scmp.eq.s32.totalorder %s15, 2
      %p75 = por %p73, %p74
      %p76 = scmp.ne.s32.totalorder %s67, %s68
      %p77 = scmp.eq.s32.totalorder %s15, 0
      %p78 = por %p76, %p77
      %p79 = scmp.ne.s32.totalorder %s67, %s68
      %p80 = scmp.eq.s32.totalorder %s16, 2
      %p81 = por %p79, %p80
      %p83 = scmp.ne.s32.totalorder %s68, %s82
      %p84 = scmp.eq.s32.totalorder %s16, 0
      %p85 = por %p83, %p84
      %s86 = ssub.s32 %s10, %s17
      %p87 = scmp.eq.s32.totalorder %s86, 0
      %s89 = sadd.s32 %s88, 1
      %s90 = scalar_select %p87, %s88, %s89
      %p93 = pneg %p87
      %p94 = scmp.eq.s32.totalorder %s10, 2
      %p95 = por %p93, %p94
      %p96 = scmp.ne.s32.totalorder %s88, %s91
      %p97 = scmp.eq.s32.totalorder %s10, 0
      %p98 = por %p96, %p97
      %p99 = scmp.ne.s32.totalorder %s88, %s91
      %p100 = scmp.eq.s32.totalorder %s15, 2
      %p101 = por %p99, %p100
      %p102 = scmp.ne.s32.totalorder %s91, %s92
      %p103 = scmp.eq.s32.totalorder %s15, 0
      %p104 = por %p102, %p103
      %p105 = scmp.ne.s32.totalorder %s91, %s92
      %p106 = scmp.eq.s32.totalorder %s16, 2
      %p107 = por %p105, %p106
      %p109 = scmp.ne.s32.totalorder %s92, %s108
      %p110 = scmp.eq.s32.totalorder %s16, 0
      %p111 = por %p109, %p110
      %p112 = scmp.le.s32.totalorder 1, %s10
      %p113 = scmp.lt.s32.totalorder %s10, 4
      %p114 = pnand %p112, %p113
      %p115 = pneg %p114
      // Predicated region
      $region9: #{tpu_custom_call.1} parent=5 // pred_check
        _
      $region10: #{tpu_custom_call.1} parent=5 // pred_check_branch
        %117 = sbr.rel (%p114) target = $region12
      $region11: #{tpu_custom_call.1} parent=5 // pred_region
        %s118 = ssub.s32 %s10, 1
        // Predicated region
        $region13: #{tpu_custom_call.1} parent=11 // pred_check
          %p119 = pneg %p57
        $region14: #{tpu_custom_call.1} parent=11 // pred_check_branch
          %121 = sbr.rel (%p119) target = $region16
        $region15: #{tpu_custom_call.1} parent=11 // pred_region
          _
        $region16: #{tpu_custom_call.1} parent=11 // pred_fallthru
          _
        // Predicated region
        $region17: #{tpu_custom_call.1} parent=11 // pred_check
          %p122 = pneg %p78
        $region18: #{tpu_custom_call.1} parent=11 // pred_check_branch
          %124 = sbr.rel (%p122) target = $region20
        $region19: #{tpu_custom_call.1} parent=11 // pred_region
          _
        $region20: #{tpu_custom_call.1} parent=11 // pred_fallthru
          _
      $region12: #{tpu_custom_call.1} parent=5 // pred_fallthru
        _
      %p125 = scmp.lt.s32.totalorder %s10, 3
      // Predicated region
      $region21: #{tpu_custom_call.1} parent=5 // pred_check
        %p126 = pneg %p125
      $region22: #{tpu_custom_call.1} parent=5 // pred_check_branch
        %128 = sbr.rel (%p126) target = $region24
      $region23: #{tpu_custom_call.1} parent=5 // pred_region
        // Predicated region
        $region25: #{tpu_custom_call.1} parent=23 // pred_check
          %p129 = pneg %p30
        $region26: #{tpu_custom_call.1} parent=23 // pred_check_branch
          %131 = sbr.rel (%p129) target = $region28
        $region27: #{tpu_custom_call.1} parent=23 // pred_region
          %s132 = smul.u32 16, %s10
          %s133 = ssub.s32 38, %s132
          %p134 = scmp.lt.s32.totalorder %s133, 16
          %s135 = scalar_select %p134, %s133, 16
          %s136 = smul.u32 128, %s135
          %p137 = scmp.lt.s32.totalorder %s132, 37
          %s138 = scalar_select %p137, %s132, 37
          %s139 = smul.addr %s138, 8
          %s140 = scalar_lea.vmem %s0, %s139
          %s141 = smul.u32 16, %s10
          %s142 = ssub.s32 38, %s141
          %p143 = scmp.lt.s32.totalorder %s142, 16
          %s144 = scalar_select %p143, %s142, 16
          %s145 = smul.u32 128, %s144
        $region28: #{tpu_custom_call.1} parent=23 // pred_fallthru
          _
      $region24: #{tpu_custom_call.1} parent=5 // pred_fallthru
        _
      %p146 = scmp.le.s32.totalorder 1, %s10
      %p147 = scmp.lt.s32.totalorder %s10, 4
      %p148 = pnand %p146, %p147
      %p149 = pneg %p148
      // Predicated region
      $region29: #{tpu_custom_call.1} parent=5 // pred_check
        _
      $region30: #{tpu_custom_call.1} parent=5 // pred_check_branch
        %151 = sbr.rel (%p148) target = $region32
      $region31: #{tpu_custom_call.1} parent=5 // pred_region
        %s152 = ssub.s32 %s10, 1
        %s153 = smul.u32 16, %s15
        %s154 = ssub.s32 38, %s153
        %p155 = scmp.lt.s32.totalorder %s154, 16
        %s156 = scalar_select %p155, %s154, 16
        %s157 = smul.u32 128, %s156
        %p158 = scmp.lt.s32.totalorder %s153, 37
        %s159 = scalar_select %p158, %s153, 37
        %s160 = smul.addr %s159, 8
        %s161 = scalar_lea.vmem %s0, %s160
        %p162 = pneg %p36
        %p163 = pneg %p33
        %p164 = pneg %p57
        %p165 = pneg %p54
        %p166 = pneg %p78
        %p167 = pneg %p75
        %p168 = pneg %p104
        %p169 = pneg %p101
        %s170 = sand.u32 %s91, 1
        %s171 = sand.u32 %s91, 1
        %s172 = smul.addr %s171, 128
        %s173 = scalar_lea.vmem [#allocation3], %s172
        %s174 = smul.u32 16, %s15
        %s175 = ssub.s32 38, %s174
        %p176 = scmp.lt.s32.totalorder %s175, 16
        %s177 = scalar_select %p176, %s175, 16
        %s178 = smul.u32 128, %s177
        %p179 = scmp.lt.s32.totalorder %s174, 37
        %s180 = scalar_select %p179, %s174, 37
        %s181 = smul.addr %s180, 8
        %s182 = scalar_lea.vmem %s0, %s181
        %s183 = smul.u32 16, %s15
        %s184 = ssub.s32 38, %s183
        %p185 = scmp.lt.s32.totalorder %s184, 16
        %s186 = scalar_select %p185, %s184, 16
        %s187 = smul.u32 128, %s186
        %s188 = smul.u32 16, %s15
        %s189 = ssub.s32 38, %s188
        %p190 = scmp.lt.s32.totalorder %s189, 16
        %s191 = scalar_select %p190, %s189, 16
        %s192 = smul.u32 128, %s191
        %v193 = vld [vmem:[%s182] sm:$0xff]
        %v194 = vld [vmem:[%s182 + $0x8] sm:$0xff]
        %v195 = vld [vmem:[%s182 + $0x10] sm:$0xff]
        %v196 = vld [vmem:[%s182 + $0x18] sm:$0xff]
        %v197 = vld [vmem:[%s182 + $0x20] sm:$0xff]
        %v198 = vld [vmem:[%s182 + $0x28] sm:$0xff]
        %v199 = vld [vmem:[%s182 + $0x30] sm:$0xff]
        %v200 = vld [vmem:[%s182 + $0x38] sm:$0xff]
        %v201 = vld [vmem:[%s182 + $0x40] sm:$0xff]
        %v202 = vld [vmem:[%s182 + $0x48] sm:$0xff]
        %v203 = vld [vmem:[%s182 + $0x50] sm:$0xff]
        %v204 = vld [vmem:[%s182 + $0x58] sm:$0xff]
        %v205 = vld [vmem:[%s182 + $0x60] sm:$0xff]
        %v206 = vld [vmem:[%s182 + $0x68] sm:$0xff]
        %v207 = vld [vmem:[%s182 + $0x70] sm:$0xff]
        %v208 = vld [vmem:[%s182 + $0x78] sm:$0xff]
        %v209 = vld [vmem:[%s1] sm:$0x1]
        %v211 = vlaneseq
        %v212 = vshrl.u32 %v211, 7
        %v213 = vsub.s32 0, %v212
        %v214 = vrot.slane %v209, %v213
        %v216 = vmul.f32 %v193, %v214
        %v217 = vmul.f32 %v194, %v214
        %v218 = vmul.f32 %v195, %v214
        %v219 = vmul.f32 %v196, %v214
        %v220 = vmul.f32 %v197, %v214
        %v221 = vmul.f32 %v198, %v214
        %v222 = vmul.f32 %v199, %v214
        %v223 = vmul.f32 %v200, %v214
        %v224 = vmul.f32 %v201, %v214
        %v225 = vmul.f32 %v202, %v214
        %v226 = vmul.f32 %v203, %v214
        %v227 = vmul.f32 %v204, %v214
        %v228 = vmul.f32 %v205, %v214
        %v229 = vmul.f32 %v206, %v214
        %v230 = vmul.f32 %v207, %v214
        %v231 = vmul.f32 %v208, %v214
        %vm232 = vcmask 130048
        %v233 = vsel %vm232, %v216, 0.0
        %234 = vadd.xlane.f32.xlu0 %v233
        %v235 = vpop.xlane.xlu0 %234
        %v236 = vsel %vm232, %v217, 0.0
        %237 = vadd.xlane.f32.xlu0 %v236
        %v238 = vpop.xlane.xlu0 %237
        %v239 = vsel %vm232, %v218, 0.0
        %240 = vadd.xlane.f32.xlu0 %v239
        %v241 = vpop.xlane.xlu0 %240
        %v242 = vsel %vm232, %v219, 0.0
        %243 = vadd.xlane.f32.xlu0 %v242
        %v244 = vpop.xlane.xlu0 %243
        %v245 = vsel %vm232, %v220, 0.0
        %246 = vadd.xlane.f32.xlu0 %v245
        %v247 = vpop.xlane.xlu0 %246
        %v248 = vsel %vm232, %v221, 0.0
        %249 = vadd.xlane.f32.xlu0 %v248
        %v250 = vpop.xlane.xlu0 %249
        %v251 = vsel %vm232, %v222, 0.0
        %252 = vadd.xlane.f32.xlu0 %v251
        %v253 = vpop.xlane.xlu0 %252
        %v254 = vsel %vm232, %v223, 0.0
        %255 = vadd.xlane.f32.xlu0 %v254
        %v256 = vpop.xlane.xlu0 %255
        %v257 = vsel %vm232, %v224, 0.0
        %258 = vadd.xlane.f32.xlu0 %v257
        %v259 = vpop.xlane.xlu0 %258
        %v260 = vsel %vm232, %v225, 0.0
        %261 = vadd.xlane.f32.xlu0 %v260
        %v262 = vpop.xlane.xlu0 %261
        %v263 = vsel %vm232, %v226, 0.0
        %264 = vadd.xlane.f32.xlu0 %v263
        %v265 = vpop.xlane.xlu0 %264
        %v266 = vsel %vm232, %v227, 0.0
        %267 = vadd.xlane.f32.xlu0 %v266
        %v268 = vpop.xlane.xlu0 %267
        %v269 = vsel %vm232, %v228, 0.0
        %270 = vadd.xlane.f32.xlu0 %v269
        %v271 = vpop.xlane.xlu0 %270
        %v272 = vsel %vm232, %v229, 0.0
        %273 = vadd.xlane.f32.xlu0 %v272
        %v274 = vpop.xlane.xlu0 %273
        %v275 = vsel %vm232, %v230, 0.0
        %276 = vadd.xlane.f32.xlu0 %v275
        %v277 = vpop.xlane.xlu0 %276
        %v278 = vsel %vm232, %v231, 0.0
        %279 = vadd.xlane.f32.xlu0 %v278
        %v280 = vpop.xlane.xlu0 %279
        %s281 = sld [smem:[#allocation2]]
        %v282 = vstv %s281
        %v283 = vadd.f32 %v235, %v282
        %v284 = vadd.f32 %v238, %v282
        %v285 = vadd.f32 %v241, %v282
        %v286 = vadd.f32 %v244, %v282
        %v287 = vadd.f32 %v247, %v282
        %v288 = vadd.f32 %v250, %v282
        %v289 = vadd.f32 %v253, %v282
        %v290 = vadd.f32 %v256, %v282
        %v291 = vadd.f32 %v259, %v282
        %v292 = vadd.f32 %v262, %v282
        %v293 = vadd.f32 %v265, %v282
        %v294 = vadd.f32 %v268, %v282
        %v295 = vadd.f32 %v271, %v282
        %v296 = vadd.f32 %v274, %v282
        %v297 = vadd.f32 %v277, %v282
        %v298 = vadd.f32 %v280, %v282
        %v299 = vxor.u32 %v283, 2147483648
        %v300 = vxor.u32 %v284, 2147483648
        %v301 = vxor.u32 %v285, 2147483648
        %v302 = vxor.u32 %v286, 2147483648
        %v303 = vxor.u32 %v287, 2147483648
        %v304 = vxor.u32 %v288, 2147483648
        %v305 = vxor.u32 %v289, 2147483648
        %v306 = vxor.u32 %v290, 2147483648
        %v307 = vxor.u32 %v291, 2147483648
        %v308 = vxor.u32 %v292, 2147483648
        %v309 = vxor.u32 %v293, 2147483648
        %v310 = vxor.u32 %v294, 2147483648
        %v311 = vxor.u32 %v295, 2147483648
        %v312 = vxor.u32 %v296, 2147483648
        %v313 = vxor.u32 %v297, 2147483648
        %v314 = vxor.u32 %v298, 2147483648
        %v315 = vmul.f32 %v299, 1.442695
        %v316 = vpow.pop %v315
        %v317 = vmul.f32 %v300, 1.442695
        %v318 = vpow.pop %v317
        %v319 = vmul.f32 %v301, 1.442695
        %v320 = vpow.pop %v319
        %v321 = vmul.f32 %v302, 1.442695
        %v322 = vpow.pop %v321
        %v323 = vmul.f32 %v303, 1.442695
        %v324 = vpow.pop %v323
        %v325 = vmul.f32 %v304, 1.442695
        %v326 = vpow.pop %v325
        %v327 = vmul.f32 %v305, 1.442695
        %v328 = vpow.pop %v327
        %v329 = vmul.f32 %v306, 1.442695
        %v330 = vpow.pop %v329
        %v331 = vmul.f32 %v307, 1.442695
        %v332 = vpow.pop %v331
        %v333 = vmul.f32 %v308, 1.442695
        %v334 = vpow.pop %v333
        %v335 = vmul.f32 %v309, 1.442695
        %v336 = vpow.pop %v335
        %v337 = vmul.f32 %v310, 1.442695
        %v338 = vpow.pop %v337
        %v339 = vmul.f32 %v311, 1.442695
        %v340 = vpow.pop %v339
        %v341 = vmul.f32 %v312, 1.442695
        %v342 = vpow.pop %v341
        %v343 = vmul.f32 %v313, 1.442695
        %v344 = vpow.pop %v343
        %v345 = vmul.f32 %v314, 1.442695
        %v346 = vpow.pop %v345
        %v347 = vadd.f32 %v316, 1.0
        %v348 = vadd.f32 %v318, 1.0
        %v349 = vadd.f32 %v320, 1.0
        %v350 = vadd.f32 %v322, 1.0
        %v351 = vadd.f32 %v324, 1.0
        %v352 = vadd.f32 %v326, 1.0
        %v353 = vadd.f32 %v328, 1.0
        %v354 = vadd.f32 %v330, 1.0
        %v355 = vadd.f32 %v332, 1.0
        %v356 = vadd.f32 %v334, 1.0
        %v357 = vadd.f32 %v336, 1.0
        %v358 = vadd.f32 %v338, 1.0
        %v359 = vadd.f32 %v340, 1.0
        %v360 = vadd.f32 %v342, 1.0
        %v361 = vadd.f32 %v344, 1.0
        %v362 = vadd.f32 %v346, 1.0
        %v363 = vrcp.pop %v347
        %v364 = vmul.f32 1.0, %v363
        %v365 = vrcp.pop %v348
        %v366 = vmul.f32 1.0, %v365
        %v367 = vrcp.pop %v349
        %v368 = vmul.f32 1.0, %v367
        %v369 = vrcp.pop %v350
        %v370 = vmul.f32 1.0, %v369
        %v371 = vrcp.pop %v351
        %v372 = vmul.f32 1.0, %v371
        %v373 = vrcp.pop %v352
        %v374 = vmul.f32 1.0, %v373
        %v375 = vrcp.pop %v353
        %v376 = vmul.f32 1.0, %v375
        %v377 = vrcp.pop %v354
        %v378 = vmul.f32 1.0, %v377
        %v379 = vrcp.pop %v355
        %v380 = vmul.f32 1.0, %v379
        %v381 = vrcp.pop %v356
        %v382 = vmul.f32 1.0, %v381
        %v383 = vrcp.pop %v357
        %v384 = vmul.f32 1.0, %v383
        %v385 = vrcp.pop %v358
        %v386 = vmul.f32 1.0, %v385
        %v387 = vrcp.pop %v359
        %v388 = vmul.f32 1.0, %v387
        %v389 = vrcp.pop %v360
        %v390 = vmul.f32 1.0, %v389
        %v391 = vrcp.pop %v361
        %v392 = vmul.f32 1.0, %v391
        %v393 = vrcp.pop %v362
        %v394 = vmul.f32 1.0, %v393
        %vm395 = vcmask 7168
        %396 = vst.msk [vmem:[%s173] sm:$0xff] %vm395, %v364
        %397 = vst.msk [vmem:[%s173 + $0x8] sm:$0xff] %vm395, %v366
        %398 = vst.msk [vmem:[%s173 + $0x10] sm:$0xff] %vm395, %v368
        %399 = vst.msk [vmem:[%s173 + $0x18] sm:$0xff] %vm395, %v370
        %400 = vst.msk [vmem:[%s173 + $0x20] sm:$0xff] %vm395, %v372
        %401 = vst.msk [vmem:[%s173 + $0x28] sm:$0xff] %vm395, %v374
        %402 = vst.msk [vmem:[%s173 + $0x30] sm:$0xff] %vm395, %v376
        %403 = vst.msk [vmem:[%s173 + $0x38] sm:$0xff] %vm395, %v378
        %404 = vst.msk [vmem:[%s173 + $0x40] sm:$0xff] %vm395, %v380
        %405 = vst.msk [vmem:[%s173 + $0x48] sm:$0xff] %vm395, %v382
        %406 = vst.msk [vmem:[%s173 + $0x50] sm:$0xff] %vm395, %v384
        %407 = vst.msk [vmem:[%s173 + $0x58] sm:$0xff] %vm395, %v386
        %408 = vst.msk [vmem:[%s173 + $0x60] sm:$0xff] %vm395, %v388
        %409 = vst.msk [vmem:[%s173 + $0x68] sm:$0xff] %vm395, %v390
        %410 = vst.msk [vmem:[%s173 + $0x70] sm:$0xff] %vm395, %v392
        %411 = vst.msk [vmem:[%s173 + $0x78] sm:$0xff] %vm395, %v394
        %s412 = sand.u32 %s91, 1
        %s413 = sand.u32 %s91, 1
        %s414 = smul.addr %s413, 128
        %s415 = scalar_lea.vmem [#allocation3], %s414
        // Predicated region
        $region33: #{tpu_custom_call.1} parent=31 // pred_check
          %p416 = pneg %p101
        $region34: #{tpu_custom_call.1} parent=31 // pred_check_branch
          %418 = sbr.rel (%p416) target = $region36
        $region35: #{tpu_custom_call.1} parent=31 // pred_region
          %s419 = smul.u32 16, %s15
          %s420 = ssub.s32 38, %s419
          %p421 = scmp.lt.s32.totalorder %s420, 16
          %s422 = scalar_select %p421, %s420, 16
          %s423 = smul.u32 128, %s422
          %p424 = scmp.ne.s32.totalorder 0, %s423
          %s425 = smul.addr %s419, 8
          %s426 = scalar_lea.vmem %s3, %s425
          // Predicated region
          $region37: #{tpu_custom_call.1} parent=35 // pred_check
            %p427 = pneg %p424
          $region38: #{tpu_custom_call.1} parent=35 // pred_check_branch
            %429 = sbr.rel (%p427) target = $region40
          $region39: #{tpu_custom_call.1} parent=35 // pred_region
            // Predicated region
            $region41: #{tpu_custom_call.1} parent=39 // pred_check
              _
            $region42: #{tpu_custom_call.1} parent=39 // pred_check_branch
              %431 = sbr.rel (0) target = $region44
            $region43: #{tpu_custom_call.1} parent=39 // pred_region
              // Predicated region
              $region63: #{tpu_custom_call.1} parent=43 // pred_check
                _
              $region64: #{tpu_custom_call.1} parent=43 // pred_check_branch
                %511 = sbr.rel (0) target = $region66
              $region65: #{tpu_custom_call.1} parent=43 // pred_region
                %s512 = sshrl.u32 %s422, 4
                // While loop
                $region67: #{tpu_custom_call.1} parent=65 // loop_pre_header
                  _
                $region68: #{tpu_custom_call.1} parent=65 // loop_header
                  %s514 = sphi 0, %s516
                  %p515 = scmp.ge.s32.totalorder %s514, %s512
                  %s519 = sphi 0, %s556
                  %s520 = sphi %s415, %s559
                  %s521 = sphi %s426, %s560
                $region69: #{tpu_custom_call.1} parent=65 // loop_header_branch
                  %518 = sbr.rel (%p515) target = $region73
                $region70: #{tpu_custom_call.1} parent=65 // loop_body
                  %v522 = vld [vmem:[%s520] sm:$0xff]
                  %523 = vst [vmem:[%s521] sm:$0xff] %v522
                  %v524 = vld [vmem:[%s520 + $0x8] sm:$0xff]
                  %525 = vst [vmem:[%s521 + $0x8] sm:$0xff] %v524
                  %v526 = vld [vmem:[%s520 + $0x10] sm:$0xff]
                  %527 = vst [vmem:[%s521 + $0x10] sm:$0xff] %v526
                  %v528 = vld [vmem:[%s520 + $0x18] sm:$0xff]
                  %529 = vst [vmem:[%s521 + $0x18] sm:$0xff] %v528
                  %v530 = vld [vmem:[%s520 + $0x20] sm:$0xff]
                  %531 = vst [vmem:[%s521 + $0x20] sm:$0xff] %v530
                  %v532 = vld [vmem:[%s520 + $0x28] sm:$0xff]
                  %533 = vst [vmem:[%s521 + $0x28] sm:$0xff] %v532
                  %v534 = vld [vmem:[%s520 + $0x30] sm:$0xff]
                  %535 = vst [vmem:[%s521 + $0x30] sm:$0xff] %v534
                  %v536 = vld [vmem:[%s520 + $0x38] sm:$0xff]
                  %537 = vst [vmem:[%s521 + $0x38] sm:$0xff] %v536
                  %v538 = vld [vmem:[%s520 + $0x40] sm:$0xff]
                  %539 = vst [vmem:[%s521 + $0x40] sm:$0xff] %v538
                  %v540 = vld [vmem:[%s520 + $0x48] sm:$0xff]
                  %541 = vst [vmem:[%s521 + $0x48] sm:$0xff] %v540
                  %v542 = vld [vmem:[%s520 + $0x50] sm:$0xff]
                  %543 = vst [vmem:[%s521 + $0x50] sm:$0xff] %v542
                  %v544 = vld [vmem:[%s520 + $0x58] sm:$0xff]
                  %545 = vst [vmem:[%s521 + $0x58] sm:$0xff] %v544
                  %v546 = vld [vmem:[%s520 + $0x60] sm:$0xff]
                  %547 = vst [vmem:[%s521 + $0x60] sm:$0xff] %v546
                  %v548 = vld [vmem:[%s520 + $0x68] sm:$0xff]
                  %549 = vst [vmem:[%s521 + $0x68] sm:$0xff] %v548
                  %v550 = vld [vmem:[%s520 + $0x70] sm:$0xff]
                  %551 = vst [vmem:[%s521 + $0x70] sm:$0xff] %v550
                  %v552 = vld [vmem:[%s520 + $0x78] sm:$0xff]
                  %553 = vst [vmem:[%s521 + $0x78] sm:$0xff] %v552
                  %s554 = sadd.s32 1, %s519
                  %p555 = scmp.ge.s32.totalorder %s554, %s512
                  %s556 = scalar_select %p555, 0, %s554
                  %s557 = smul.u32 %s556, 128
                  %s558 = smul.u32 %s556, 128
                  %s559 = scalar_lea.vmem %s415, %s557 [#allocation3]
                  %s560 = scalar_lea.vmem %s426, %s558
                $region71: #{tpu_custom_call.1} parent=65 // loop_footer
                  %s516 = sadd.s32 %s514, 1
                $region72: #{tpu_custom_call.1} parent=65 // loop_footer_branch
                  %513 = sbr.rel target = $region68
                $region73: #{tpu_custom_call.1} parent=65 // loop_exit
                  _
                %s561 = sshrl.u32 %s422, 4
                %s562 = sand.u32 %s422, 15
                %s563 = smul.u32 %s561, 16
                %s564 = smul.u32 8, %s563
                %s565 = scalar_lea.vmem %s415, %s564 [#allocation3]
                %s566 = smul.u32 8, %s563
                %s567 = scalar_lea.vmem %s426, %s566
                // While loop
                $region74: #{tpu_custom_call.1} parent=65 // loop_pre_header
                  _
                $region75: #{tpu_custom_call.1} parent=65 // loop_header
                  %s569 = sphi 0, %s571
                  %p570 = scmp.ge.s32.totalorder %s569, %s562
                  %s574 = sphi 0, %s581
                  %s575 = sphi %s565, %s584
                  %s576 = sphi %s567, %s585
                $region76: #{tpu_custom_call.1} parent=65 // loop_header_branch
                  %573 = sbr.rel (%p570) target = $region80
                $region77: #{tpu_custom_call.1} parent=65 // loop_body
                  %v577 = vld [vmem:[%s575] sm:$0xff]
                  %578 = vst [vmem:[%s576] sm:$0xff] %v577
                  %s579 = sadd.s32 1, %s574
                  %p580 = scmp.ge.s32.totalorder %s579, %s562
                  %s581 = scalar_select %p580, 0, %s579
                  %s582 = smul.u32 %s581, 8
                  %s583 = smul.u32 %s581, 8
                  %s584 = scalar_lea.vmem %s565, %s582 [#allocation3]
                  %s585 = scalar_lea.vmem %s567, %s583
                $region78: #{tpu_custom_call.1} parent=65 // loop_footer
                  %s571 = sadd.s32 %s569, 1
                $region79: #{tpu_custom_call.1} parent=65 // loop_footer_branch
                  %568 = sbr.rel target = $region75
                $region80: #{tpu_custom_call.1} parent=65 // loop_exit
                  _
              $region66: #{tpu_custom_call.1} parent=43 // pred_fallthru
                _
              // Predicated region
              $region81: #{tpu_custom_call.1} parent=43 // pred_check
                _
              $region82: #{tpu_custom_call.1} parent=43 // pred_check_branch
                %587 = sbr.rel target = $region84
              $region83: #{tpu_custom_call.1} parent=43 // pred_region
                _
              $region84: #{tpu_custom_call.1} parent=43 // pred_fallthru
                _
            $region44: #{tpu_custom_call.1} parent=39 // pred_fallthru
              _
            // Predicated region
            $region45: #{tpu_custom_call.1} parent=39 // pred_check
              _
            $region46: #{tpu_custom_call.1} parent=39 // pred_check_branch
              %433 = sbr.rel target = $region48
            $region47: #{tpu_custom_call.1} parent=39 // pred_region
              %s435 = ssub.s32 256, 1
              %s436 = sshrl.u32 %s422, 4
              // While loop
              $region49: #{tpu_custom_call.1} parent=47 // loop_pre_header
                _
              $region50: #{tpu_custom_call.1} parent=47 // loop_header
                %s438 = sphi 0, %s440
                %p439 = scmp.ge.s32.totalorder %s438, %s436
                %s443 = sphi 0, %s480
                %s444 = sphi %s415, %s483
                %s445 = sphi %s426, %s484
              $region51: #{tpu_custom_call.1} parent=47 // loop_header_branch
                %442 = sbr.rel (%p439) target = $region55
              $region52: #{tpu_custom_call.1} parent=47 // loop_body
                %v446 = vld [vmem:[%s444] sm:%s435]
                %447 = vst [vmem:[%s445] sm:%s435] %v446
                %v448 = vld [vmem:[%s444 + $0x8] sm:%s435]
                %449 = vst [vmem:[%s445 + $0x8] sm:%s435] %v448
                %v450 = vld [vmem:[%s444 + $0x10] sm:%s435]
                %451 = vst [vmem:[%s445 + $0x10] sm:%s435] %v450
                %v452 = vld [vmem:[%s444 + $0x18] sm:%s435]
                %453 = vst [vmem:[%s445 + $0x18] sm:%s435] %v452
                %v454 = vld [vmem:[%s444 + $0x20] sm:%s435]
                %455 = vst [vmem:[%s445 + $0x20] sm:%s435] %v454
                %v456 = vld [vmem:[%s444 + $0x28] sm:%s435]
                %457 = vst [vmem:[%s445 + $0x28] sm:%s435] %v456
                %v458 = vld [vmem:[%s444 + $0x30] sm:%s435]
                %459 = vst [vmem:[%s445 + $0x30] sm:%s435] %v458
                %v460 = vld [vmem:[%s444 + $0x38] sm:%s435]
                %461 = vst [vmem:[%s445 + $0x38] sm:%s435] %v460
                %v462 = vld [vmem:[%s444 + $0x40] sm:%s435]
                %463 = vst [vmem:[%s445 + $0x40] sm:%s435] %v462
                %v464 = vld [vmem:[%s444 + $0x48] sm:%s435]
                %465 = vst [vmem:[%s445 + $0x48] sm:%s435] %v464
                %v466 = vld [vmem:[%s444 + $0x50] sm:%s435]
                %467 = vst [vmem:[%s445 + $0x50] sm:%s435] %v466
                %v468 = vld [vmem:[%s444 + $0x58] sm:%s435]
                %469 = vst [vmem:[%s445 + $0x58] sm:%s435] %v468
                %v470 = vld [vmem:[%s444 + $0x60] sm:%s435]
                %471 = vst [vmem:[%s445 + $0x60] sm:%s435] %v470
                %v472 = vld [vmem:[%s444 + $0x68] sm:%s435]
                %473 = vst [vmem:[%s445 + $0x68] sm:%s435] %v472
                %v474 = vld [vmem:[%s444 + $0x70] sm:%s435]
                %475 = vst [vmem:[%s445 + $0x70] sm:%s435] %v474
                %v476 = vld [vmem:[%s444 + $0x78] sm:%s435]
                %477 = vst [vmem:[%s445 + $0x78] sm:%s435] %v476
                %s478 = sadd.s32 1, %s443
                %p479 = scmp.ge.s32.totalorder %s478, %s436
                %s480 = scalar_select %p479, 0, %s478
                %s481 = smul.u32 %s480, 128
                %s482 = smul.u32 %s480, 128
                %s483 = scalar_lea.vmem %s415, %s481 [#allocation3]
                %s484 = scalar_lea.vmem %s426, %s482
              $region53: #{tpu_custom_call.1} parent=47 // loop_footer
                %s440 = sadd.s32 %s438, 1
              $region54: #{tpu_custom_call.1} parent=47 // loop_footer_branch
                %437 = sbr.rel target = $region50
              $region55: #{tpu_custom_call.1} parent=47 // loop_exit
                _
              %s485 = sshrl.u32 %s422, 4
              %s486 = sand.u32 %s422, 15
              %s487 = smul.u32 %s485, 16
              %s488 = smul.u32 8, %s487
              %s489 = scalar_lea.vmem %s415, %s488 [#allocation3]
              %s490 = smul.u32 8, %s487
              %s491 = scalar_lea.vmem %s426, %s490
              // While loop
              $region56: #{tpu_custom_call.1} parent=47 // loop_pre_header
                _
              $region57: #{tpu_custom_call.1} parent=47 // loop_header
                %s493 = sphi 0, %s495
                %p494 = scmp.ge.s32.totalorder %s493, %s486
                %s498 = sphi 0, %s505
                %s499 = sphi %s489, %s508
                %s500 = sphi %s491, %s509
              $region58: #{tpu_custom_call.1} parent=47 // loop_header_branch
                %497 = sbr.rel (%p494) target = $region62
              $region59: #{tpu_custom_call.1} parent=47 // loop_body
                %v501 = vld [vmem:[%s499] sm:%s435]
                %502 = vst [vmem:[%s500] sm:%s435] %v501
                %s503 = sadd.s32 1, %s498
                %p504 = scmp.ge.s32.totalorder %s503, %s486
                %s505 = scalar_select %p504, 0, %s503
                %s506 = smul.u32 %s505, 8
                %s507 = smul.u32 %s505, 8
                %s508 = scalar_lea.vmem %s489, %s506 [#allocation3]
                %s509 = scalar_lea.vmem %s491, %s507
              $region60: #{tpu_custom_call.1} parent=47 // loop_footer
                %s495 = sadd.s32 %s493, 1
              $region61: #{tpu_custom_call.1} parent=47 // loop_footer_branch
                %492 = sbr.rel target = $region57
              $region62: #{tpu_custom_call.1} parent=47 // loop_exit
                _
            $region48: #{tpu_custom_call.1} parent=39 // pred_fallthru
              _
          $region40: #{tpu_custom_call.1} parent=35 // pred_fallthru
            _
          %588 = vnop
        $region36: #{tpu_custom_call.1} parent=31 // pred_fallthru
          _
      $region32: #{tpu_custom_call.1} parent=5 // pred_fallthru
        _
      %p589 = scmp.le.s32.totalorder 2, %s10
      // Predicated region
      $region85: #{tpu_custom_call.1} parent=5 // pred_check
        %p590 = pneg %p589
      $region86: #{tpu_custom_call.1} parent=5 // pred_check_branch
        %592 = sbr.rel (%p590) target = $region88
      $region87: #{tpu_custom_call.1} parent=5 // pred_region
        %s593 = ssub.s32 %s10, 2
        // Predicated region
        $region89: #{tpu_custom_call.1} parent=87 // pred_check
          %p594 = pneg %p107
        $region90: #{tpu_custom_call.1} parent=87 // pred_check_branch
          %596 = sbr.rel (%p594) target = $region92
        $region91: #{tpu_custom_call.1} parent=87 // pred_region
          %s597 = sand.u32 %s92, 1
          %s598 = sand.u32 %s92, 1
          %s599 = smul.addr %s598, 128
          %s600 = scalar_lea.vmem [#allocation3], %s599
        $region92: #{tpu_custom_call.1} parent=87 // pred_fallthru
          _
      $region88: #{tpu_custom_call.1} parent=5 // pred_fallthru
        _
    $region6: #{tpu_custom_call.1} parent=1 // loop_footer
      %s14 = sadd.s32 1, %s10
    $region7: #{tpu_custom_call.1} parent=1 // loop_footer_branch
      %9 = sbr.rel target = $region3
    $region8: #{tpu_custom_call.1} parent=1 // loop_exit
      _

</llo_original>
